<compile_context>
chip_gen: v5e
topology: v5e:2x2
jax: 0.10.0
libtpu: 0.0.40
codegen_flags: <defaults>
</compile_context>

<pallas_src>
import functools

import jax
import jax.numpy as jnp
from jax import lax
from jax.experimental import pallas as pl
from jax.experimental.pallas import tpu as pltpu

_MIB = 1024 * 1024


def scene_score_kernel(cmin_ref, cs_ref, co_ref, out_ref, acc_ref, *, lane_chunk):
    """Grid (S, n_t): one scene per s, time tiled along t (reduction axis).

    cmin_ref : (S,) f32 in SMEM (scalar prefetch) -- global min of C_scene[0] per scene
    cs_ref   : (B, F, tT)  rendered cochleagram tile (scene dim squeezed)
    co_ref   : (F, tT)     observed cochleagram tile (scene dim squeezed)
    out_ref  : (1, 1, B)   masked sum of squared errors; written at finalize only
    acc_ref  : (B, tT) f32 VMEM scratch: per-lane partial sums across the t axis
    """
    s = pl.program_id(0)
    t = pl.program_id(1)

    @pl.when(t == 0)
    def _init():
        acc_ref[...] = jnp.zeros_like(acc_ref)

    cmin = cmin_ref[s]                      # f32 scalar read from SMEM (free scalar slot)
    tT = acc_ref.shape[1]
    n_chunks = tT // lane_chunk             # static

    def chunk_body(i, carry):
        off = pl.multiple_of(i * lane_chunk, lane_chunk)
        cs = cs_ref[:, :, pl.ds(off, lane_chunk)].astype(jnp.float32)   # [B, F, c]
        co = co_ref[:, pl.ds(off, lane_chunk)].astype(jnp.float32)      # [F, c]

        # --- set_likelihood_mask (chunk-local): loudest freq bin per time frame.
        # Exact because freq is never tiled; cmin is a global reduce, precomputed.
        cs0 = cs[0]                                                     # [F, c]
        colmax = jnp.max(cs0, axis=0, keepdims=True)
        mask = jnp.logical_and(cs0 == colmax, cs0 > cmin)               # [F, c]

        # --- masked squared error; mask is 0/1 so cs*m - co*m == (cs - co) on mask.
        d = jnp.where(mask[None, :, :], cs - co[None, :, :], 0.0)       # [B, F, c]
        # Sublane (freq) reduce per chunk; defer the cross-lane (XLU) reduce to finalize.
        acc_ref[:, pl.ds(off, lane_chunk)] += jnp.sum(d * d, axis=1)    # [B, c]
        return carry

    # Fully unrolled: DMA tile stays big, live vregs stay ~O(B*F*lane_chunk).
    lax.fori_loop(0, n_chunks, chunk_body, 0, unroll=True)

    @pl.when(t == pl.num_programs(1) - 1)
    def _finalize():
        out_ref[0, 0] = jnp.sum(acc_ref[...], axis=1)     # single lane reduce / scene


def _vmem_budget_bytes():
    """~75% of the chip's VMEM (48 MiB on v7x's 64 MiB; ~96 MiB on v5e/v6e's 128 MiB)."""
    cap = None
    try:
        info = pltpu.get_tpu_info()
        cap = getattr(info, "vmem_capacity_bytes", None)
    except Exception:
        cap = None
    if not cap:
        cap = 64 * _MIB            # conservative fallback = v7x per-TensorCore VMEM
    return min(int(cap) * 3 // 4, 100 * _MIB)


def _pick_time_tile(T, B, F, itemsize, budget_bytes, cap_lanes=None):
    """Largest multiple-of-128 divisor of T whose double-buffered working set fits."""
    if T % 128 != 0:
        return T                   # full-extent block on the lane dim (allowed)
    # 2x cs + 2x co (pipeline double-buffer) + f32 accumulator, per lane of the tile.
    per_lane = 2 * (B + 1) * F * itemsize + 4 * B
    max_lanes = max(128, budget_bytes // per_lane)
    if cap_lanes is not None:
        max_lanes = min(max_lanes, max(128, cap_lanes))
    best = 128
    for cand in range(128, T + 1, 128):
        if T % cand == 0 and cand <= max_lanes:
            best = cand
    return best


def _pick_lane_chunk(tT):
    """Sub-chunk of the time tile processed per inner step (bounds vreg pressure)."""
    if tT % 128 != 0:
        return tT
    for cand in (512, 384, 256, 128):
        if tT % cand == 0:
            return cand
    return 128


def scenes_forward(c_scene, c_obs, sigma, lq, lp, *, time_tile=None,
                   vmem_budget_bytes=None):
    """c_scene: [S, B, F, T], c_obs: [S, F, T], sigma: [S], lq/lp: [S, B] -> [S*B].

    Cochleagrams may be f32 or bf16 (bf16 halves the dominant HBM read; the kernel
    upcasts to f32 — equality-based mask ties then follow the bf16 values).
    """
    S, B, F, T = c_scene.shape
    assert c_obs.shape == (S, F, T), c_obs.shape
    assert sigma.shape == (S,), sigma.shape
    assert lq.shape == (S, B) and lp.shape == (S, B)

    itemsize = jnp.dtype(c_scene.dtype).itemsize
    budget = vmem_budget_bytes if vmem_budget_bytes is not None else _vmem_budget_bytes()
    tT = _pick_time_tile(T, B, F, itemsize, budget, cap_lanes=time_tile)
    n_t = T // tT
    assert n_t * tT == T
    lane_chunk = _pick_lane_chunk(tT)

    # Actual per-step VMEM working set; keep the limit at least this + headroom.
    usage = 2 * (B + 1) * F * tT * itemsize + 4 * B * tT + 2 * 4 * B
    vmem_limit = int(max(budget, usage + 2 * _MIB))

    f32 = jnp.float32
    # Global min of C_scene[0] per scene (set_likelihood_mask).  Lives in the same jit
    # region so XLA fuses the convert+reduce and overlaps it with the pallas warmup.
    # TODO(synk): ideally cmin is produced where C_scene is rendered and cached.
    cmin = jnp.min(c_scene[:, 0].astype(f32), axis=(1, 2))            # (S,)

    kernel = functools.partial(scene_score_kernel, lane_chunk=lane_chunk)
    sse = pl.pallas_call(
        kernel,
        out_shape=jax.ShapeDtypeStruct((S, 1, B), jnp.float32),
        grid_spec=pltpu.PrefetchScalarGridSpec(
            num_scalar_prefetch=1,            # cmin -> SMEM
            grid=(S, n_t),
            in_specs=[
                pl.BlockSpec((None, B, F, tT), lambda s, t, cm: (s, 0, 0, t)),
                pl.BlockSpec((None, F, tT), lambda s, t, cm: (s, 0, t)),
            ],
            out_specs=pl.BlockSpec((1, 1, B), lambda s, t, cm: (s, 0, 0)),
            scratch_shapes=[pltpu.VMEM((B, tT), jnp.float32)],
        ),
        compiler_params=pltpu.CompilerParams(
            # Scene axis parallel (v7x 2-TC sharding); time axis is the reduction.
            # TODO(synk): if S == 1 (or odd) on v7x, add a second parallel split (over B
            # or two half-T partial reductions combined on host) to fill both cores.
            dimension_semantics=("parallel", "arbitrary"),
            vmem_limit_bytes=vmem_limit,
        ),
    )(cmin, c_scene, c_obs)

    # Scalar epilogue (fused by XLA): ll = coef * sse, score = ll - lq + lp.
    sse = sse.reshape(S, B)
    coef = -0.5 / (sigma.astype(f32) ** 2)                             # (S,)
    scores = coef[:, None] * sse - lq.astype(f32) + lp.astype(f32)
    return scores.reshape(S * B)                                       # torch.cat(scores)


scenes_forward_jit = jax.jit(
    scenes_forward, static_argnames=("time_tile", "vmem_budget_bytes"))


def scenes_forward_ref(c_scene, c_obs, sigma, lq, lp):
    """Pure-JAX reference mirroring the PyTorch semantics."""
    S, B, F, T = c_scene.shape
    scores = []
    for s in range(S):
        cs = c_scene[s].astype(jnp.float32)
        co = c_obs[s].astype(jnp.float32)
        cs0 = cs[0]
        mask = ((cs0 == cs0.max(axis=0, keepdims=True)) & (cs0 > cs0.min())).astype(cs.dtype)
        cs_m = (cs * mask[None]).reshape(B, -1)
        co_m = (co * mask)[None].repeat(B, axis=0).reshape(B, -1)
        ll = -0.5 * jnp.sum((cs_m - co_m) ** 2, axis=1) / sigma[s].astype(jnp.float32) ** 2
        scores.append(ll - lq[s] + lp[s])
    return jnp.concatenate(scores)


if __name__ == "__main__":
    key = jax.random.PRNGKey(0)
    # scenes, batch (context.batch_size), freq bins, time frames
    S, B, F, T = 2, 2, 16, 1536          # 1536 = 12 * 128 lanes

    k1, k2, k3, k4 = jax.random.split(key, 4)
    c_scene = jax.random.uniform(k1, (S, B, F, T), dtype=jnp.float32)   # rendered cochleagrams
    c_obs = jax.random.uniform(k2, (S, F, T), dtype=jnp.float32)        # observed cochleagrams
    sigma = jnp.full((S,), 0.5, dtype=jnp.float32)                      # likelihood sigma
    lq = jax.random.normal(k3, (S, B), dtype=jnp.float32)               # precomputed log q terms
    lp = jax.random.normal(k4, (S, B), dtype=jnp.float32)               # precomputed log p terms

    out = scenes_forward_jit(c_scene, c_obs, sigma, lq, lp)
    jax.block_until_ready(out)

    ref = scenes_forward_ref(c_scene, c_obs, sigma, lq, lp)
    assert out.shape == (S * B,)
    assert jnp.allclose(out, ref, rtol=1e-4, atol=1e-4), (out, ref)

    print("KERNEL_OK")
</pallas_src>

<mosaic_0001>
module attributes {stable_mosaic.version = 11 : i64} {
  func.func @scene_score_kernel(%arg0: i32, %arg1: i32, %arg2: memref<2xf32, #tpu.memory_space<smem>>, %arg3: memref<1x2x16x1536xf32, #tpu.memory_space<vmem>>, %arg4: memref<1x16x1536xf32, #tpu.memory_space<vmem>>, %arg5: memref<1x1x2xf32, #tpu.memory_space<vmem>>, %arg6: memref<2x1536xf32, #tpu.memory_space<vmem>>) attributes {dimension_semantics = [#tpu.dimension_semantics<parallel>, #tpu.dimension_semantics<arbitrary>], iteration_bounds = array<i64: 2, 1>, scalar_prefetch = 1 : i64, scratch_operands = 1 : i64, tpu.core_type = #tpu.core_type<tc>, window_params = [{transform_indices = @transform_0, window_bounds = array<i64: 1, 2, 16, 1536>}, {transform_indices = @transform_1, window_bounds = array<i64: 1, 16, 1536>}, {transform_indices = @transform_2, window_bounds = array<i64: 1, 1, 2>}]} {
    %c0_i32 = arith.constant 0 : i32
    %0 = arith.cmpi eq, %arg1, %c0_i32 : i32
    %1 = arith.extui %0 : i1 to i32
    %c0_i32_0 = arith.constant 0 : i32
    %2 = arith.cmpi ne, %1, %c0_i32_0 : i32
    scf.if %2 {
      %cst_34 = arith.constant 0.000000e+00 : f32
      %104 = vector.broadcast %cst_34 : f32 to vector<2x1536xf32>
      %c0_35 = arith.constant 0 : index
      %c0_36 = arith.constant 0 : index
      %105 = vector.load %arg6[%c0_35, %c0_36] : memref<2x1536xf32, #tpu.memory_space<vmem>>, vector<2x1536xf32>
      tpu.vector_store %arg6[%c0_35, %c0_36], %104 {strides = array<i32>} : memref<2x1536xf32, #tpu.memory_space<vmem>>, vector<2x1536xf32>,
    } else {
    }
    %3 = arith.index_cast %arg0 : i32 to index
    %4 = memref.load %arg2[%3] : memref<2xf32, #tpu.memory_space<smem>>
    %c0_i32_1 = arith.constant 0 : i32
    %c512_i32 = arith.constant 512 : i32
    %5 = arith.muli %c0_i32_1, %c512_i32 : i32
    %6 = tpu.assume_multiple %5, 512 : i32
    %c0 = arith.constant 0 : index
    %c0_2 = arith.constant 0 : index
    %c0_3 = arith.constant 0 : index
    %7 = arith.index_cast %6 : i32 to index
    %8 = vector.load %arg3[%c0, %c0_2, %c0_3, %7] : memref<1x2x16x1536xf32, #tpu.memory_space<vmem>>, vector<1x2x16x512xf32>
    %9 = vector.shape_cast %8 : vector<1x2x16x512xf32> to vector<2x16x512xf32>
    %c0_4 = arith.constant 0 : index
    %c0_5 = arith.constant 0 : index
    %10 = arith.index_cast %6 : i32 to index
    %11 = vector.load %arg4[%c0_4, %c0_5, %10] : memref<1x16x1536xf32, #tpu.memory_space<vmem>>, vector<1x16x512xf32>
    %12 = vector.shape_cast %11 : vector<1x16x512xf32> to vector<16x512xf32>
    %13 = vector.extract_strided_slice %9 {offsets = [0, 0, 0], sizes = [1, 16, 512], strides = [1, 1, 1]} : vector<2x16x512xf32> to vector<1x16x512xf32>
    %14 = vector.shape_cast %13 : vector<1x16x512xf32> to vector<16x512xf32>
    %cst = arith.constant dense<0xFF800000> : vector<512xf32>
    %15 = vector.multi_reduction <maximumf>, %14, %cst [0] : vector<16x512xf32> to vector<512xf32>
    %16 = vector.shape_cast %15 : vector<512xf32> to vector<1x512xf32>
    %17 = vector.broadcast %16 : vector<1x512xf32> to vector<16x512xf32>
    %18 = arith.cmpf oeq, %14, %17 : vector<16x512xf32>
    %19 = vector.broadcast %4 : f32 to vector<16x512xf32>
    %20 = arith.cmpf ogt, %14, %19 : vector<16x512xf32>
    %21 = arith.andi %18, %20 : vector<16x512xi1>
    %22 = vector.shape_cast %21 : vector<16x512xi1> to vector<1x16x512xi1>
    %23 = vector.shape_cast %12 : vector<16x512xf32> to vector<1x16x512xf32>
    %24 = vector.broadcast %23 : vector<1x16x512xf32> to vector<2x16x512xf32>
    %25 = arith.subf %9, %24 : vector<2x16x512xf32>
    %cst_6 = arith.constant 0.000000e+00 : f32
    %26 = vector.shape_cast %22 : vector<1x16x512xi1> to vector<1x16x512xi1>
    %27 = vector.broadcast %26 : vector<1x16x512xi1> to vector<2x16x512xi1>
    %28 = vector.broadcast %cst_6 : f32 to vector<2x16x512xf32>
    %29 = arith.select %27, %25, %28 : vector<2x16x512xi1>, vector<2x16x512xf32>
    %c0_7 = arith.constant 0 : index
    %30 = arith.index_cast %6 : i32 to index
    %31 = vector.load %arg6[%c0_7, %30] : memref<2x1536xf32, #tpu.memory_space<vmem>>, vector<2x512xf32>
    %32 = arith.mulf %29, %29 : vector<2x16x512xf32>
    %cst_8 = arith.constant dense<0.000000e+00> : vector<2x512xf32>
    %33 = vector.multi_reduction <add>, %32, %cst_8 [1] : vector<2x16x512xf32> to vector<2x512xf32>
    %34 = arith.addf %31, %33 : vector<2x512xf32>
    %c0_9 = arith.constant 0 : index
    %35 = arith.index_cast %6 : i32 to index
    %36 = vector.load %arg6[%c0_9, %35] : memref<2x1536xf32, #tpu.memory_space<vmem>>, vector<2x512xf32>
    tpu.vector_store %arg6[%c0_9, %35], %34 {strides = array<i32>} : memref<2x1536xf32, #tpu.memory_space<vmem>>, vector<2x512xf32>,
    %c1_i32 = arith.constant 1 : i32
    %c512_i32_10 = arith.constant 512 : i32
    %37 = arith.muli %c1_i32, %c512_i32_10 : i32
    %38 = tpu.assume_multiple %37, 512 : i32
    %c0_11 = arith.constant 0 : index
    %c0_12 = arith.constant 0 : index
    %c0_13 = arith.constant 0 : index
    %39 = arith.index_cast %38 : i32 to index
    %40 = vector.load %arg3[%c0_11, %c0_12, %c0_13, %39] : memref<1x2x16x1536xf32, #tpu.memory_space<vmem>>, vector<1x2x16x512xf32>
    %41 = vector.shape_cast %40 : vector<1x2x16x512xf32> to vector<2x16x512xf32>
    %c0_14 = arith.constant 0 : index
    %c0_15 = arith.constant 0 : index
    %42 = arith.index_cast %38 : i32 to index
    %43 = vector.load %arg4[%c0_14, %c0_15, %42] : memref<1x16x1536xf32, #tpu.memory_space<vmem>>, vector<1x16x512xf32>
    %44 = vector.shape_cast %43 : vector<1x16x512xf32> to vector<16x512xf32>
    %45 = vector.extract_strided_slice %41 {offsets = [0, 0, 0], sizes = [1, 16, 512], strides = [1, 1, 1]} : vector<2x16x512xf32> to vector<1x16x512xf32>
    %46 = vector.shape_cast %45 : vector<1x16x512xf32> to vector<16x512xf32>
    %cst_16 = arith.constant dense<0xFF800000> : vector<512xf32>
    %47 = vector.multi_reduction <maximumf>, %46, %cst_16 [0] : vector<16x512xf32> to vector<512xf32>
    %48 = vector.shape_cast %47 : vector<512xf32> to vector<1x512xf32>
    %49 = vector.broadcast %48 : vector<1x512xf32> to vector<16x512xf32>
    %50 = arith.cmpf oeq, %46, %49 : vector<16x512xf32>
    %51 = vector.broadcast %4 : f32 to vector<16x512xf32>
    %52 = arith.cmpf ogt, %46, %51 : vector<16x512xf32>
    %53 = arith.andi %50, %52 : vector<16x512xi1>
    %54 = vector.shape_cast %53 : vector<16x512xi1> to vector<1x16x512xi1>
    %55 = vector.shape_cast %44 : vector<16x512xf32> to vector<1x16x512xf32>
    %56 = vector.broadcast %55 : vector<1x16x512xf32> to vector<2x16x512xf32>
    %57 = arith.subf %41, %56 : vector<2x16x512xf32>
    %cst_17 = arith.constant 0.000000e+00 : f32
    %58 = vector.shape_cast %54 : vector<1x16x512xi1> to vector<1x16x512xi1>
    %59 = vector.broadcast %58 : vector<1x16x512xi1> to vector<2x16x512xi1>
    %60 = vector.broadcast %cst_17 : f32 to vector<2x16x512xf32>
    %61 = arith.select %59, %57, %60 : vector<2x16x512xi1>, vector<2x16x512xf32>
    %c0_18 = arith.constant 0 : index
    %62 = arith.index_cast %38 : i32 to index
    %63 = vector.load %arg6[%c0_18, %62] : memref<2x1536xf32, #tpu.memory_space<vmem>>, vector<2x512xf32>
    %64 = arith.mulf %61, %61 : vector<2x16x512xf32>
    %cst_19 = arith.constant dense<0.000000e+00> : vector<2x512xf32>
    %65 = vector.multi_reduction <add>, %64, %cst_19 [1] : vector<2x16x512xf32> to vector<2x512xf32>
    %66 = arith.addf %63, %65 : vector<2x512xf32>
    %c0_20 = arith.constant 0 : index
    %67 = arith.index_cast %38 : i32 to index
    %68 = vector.load %arg6[%c0_20, %67] : memref<2x1536xf32, #tpu.memory_space<vmem>>, vector<2x512xf32>
    tpu.vector_store %arg6[%c0_20, %67], %66 {strides = array<i32>} : memref<2x1536xf32, #tpu.memory_space<vmem>>, vector<2x512xf32>,
    %c2_i32 = arith.constant 2 : i32
    %c512_i32_21 = arith.constant 512 : i32
    %69 = arith.muli %c2_i32, %c512_i32_21 : i32
    %70 = tpu.assume_multiple %69, 512 : i32
    %c0_22 = arith.constant 0 : index
    %c0_23 = arith.constant 0 : index
    %c0_24 = arith.constant 0 : index
    %71 = arith.index_cast %70 : i32 to index
    %72 = vector.load %arg3[%c0_22, %c0_23, %c0_24, %71] : memref<1x2x16x1536xf32, #tpu.memory_space<vmem>>, vector<1x2x16x512xf32>
    %73 = vector.shape_cast %72 : vector<1x2x16x512xf32> to vector<2x16x512xf32>
    %c0_25 = arith.constant 0 : index
    %c0_26 = arith.constant 0 : index
    %74 = arith.index_cast %70 : i32 to index
    %75 = vector.load %arg4[%c0_25, %c0_26, %74] : memref<1x16x1536xf32, #tpu.memory_space<vmem>>, vector<1x16x512xf32>
    %76 = vector.shape_cast %75 : vector<1x16x512xf32> to vector<16x512xf32>
    %77 = vector.extract_strided_slice %73 {offsets = [0, 0, 0], sizes = [1, 16, 512], strides = [1, 1, 1]} : vector<2x16x512xf32> to vector<1x16x512xf32>
    %78 = vector.shape_cast %77 : vector<1x16x512xf32> to vector<16x512xf32>
    %cst_27 = arith.constant dense<0xFF800000> : vector<512xf32>
    %79 = vector.multi_reduction <maximumf>, %78, %cst_27 [0] : vector<16x512xf32> to vector<512xf32>
    %80 = vector.shape_cast %79 : vector<512xf32> to vector<1x512xf32>
    %81 = vector.broadcast %80 : vector<1x512xf32> to vector<16x512xf32>
    %82 = arith.cmpf oeq, %78, %81 : vector<16x512xf32>
    %83 = vector.broadcast %4 : f32 to vector<16x512xf32>
    %84 = arith.cmpf ogt, %78, %83 : vector<16x512xf32>
    %85 = arith.andi %82, %84 : vector<16x512xi1>
    %86 = vector.shape_cast %85 : vector<16x512xi1> to vector<1x16x512xi1>
    %87 = vector.shape_cast %76 : vector<16x512xf32> to vector<1x16x512xf32>
    %88 = vector.broadcast %87 : vector<1x16x512xf32> to vector<2x16x512xf32>
    %89 = arith.subf %73, %88 : vector<2x16x512xf32>
    %cst_28 = arith.constant 0.000000e+00 : f32
    %90 = vector.shape_cast %86 : vector<1x16x512xi1> to vector<1x16x512xi1>
    %91 = vector.broadcast %90 : vector<1x16x512xi1> to vector<2x16x512xi1>
    %92 = vector.broadcast %cst_28 : f32 to vector<2x16x512xf32>
    %93 = arith.select %91, %89, %92 : vector<2x16x512xi1>, vector<2x16x512xf32>
    %c0_29 = arith.constant 0 : index
    %94 = arith.index_cast %70 : i32 to index
    %95 = vector.load %arg6[%c0_29, %94] : memref<2x1536xf32, #tpu.memory_space<vmem>>, vector<2x512xf32>
    %96 = arith.mulf %93, %93 : vector<2x16x512xf32>
    %cst_30 = arith.constant dense<0.000000e+00> : vector<2x512xf32>
    %97 = vector.multi_reduction <add>, %96, %cst_30 [1] : vector<2x16x512xf32> to vector<2x512xf32>
    %98 = arith.addf %95, %97 : vector<2x512xf32>
    %c0_31 = arith.constant 0 : index
    %99 = arith.index_cast %70 : i32 to index
    %100 = vector.load %arg6[%c0_31, %99] : memref<2x1536xf32, #tpu.memory_space<vmem>>, vector<2x512xf32>
    tpu.vector_store %arg6[%c0_31, %99], %98 {strides = array<i32>} : memref<2x1536xf32, #tpu.memory_space<vmem>>, vector<2x512xf32>,
    %c3_i32 = arith.constant 3 : i32
    %c0_i32_32 = arith.constant 0 : i32
    %101 = arith.cmpi eq, %arg1, %c0_i32_32 : i32
    %102 = arith.extui %101 : i1 to i32
    %c0_i32_33 = arith.constant 0 : i32
    %103 = arith.cmpi ne, %102, %c0_i32_33 : i32
    scf.if %103 {
      %c0_34 = arith.constant 0 : index
      %c0_35 = arith.constant 0 : index
      %104 = vector.load %arg6[%c0_34, %c0_35] : memref<2x1536xf32, #tpu.memory_space<vmem>>, vector<2x1536xf32>
      %cst_36 = arith.constant dense<0.000000e+00> : vector<2xf32>
      %105 = vector.multi_reduction <add>, %104, %cst_36 [1] : vector<2x1536xf32> to vector<2xf32>
      %c0_37 = arith.constant 0 : index
      %c0_38 = arith.constant 0 : index
      %c0_39 = arith.constant 0 : index
      %106 = vector.load %arg5[%c0_37, %c0_38, %c0_39] : memref<1x1x2xf32, #tpu.memory_space<vmem>>, vector<1x1x2xf32>
      %107 = vector.shape_cast %106 : vector<1x1x2xf32> to vector<2xf32>
      %108 = vector.shape_cast %105 : vector<2xf32> to vector<1x1x2xf32>
      tpu.vector_store %arg5[%c0_37, %c0_38, %c0_39], %108 {strides = array<i32>} : memref<1x1x2xf32, #tpu.memory_space<vmem>>, vector<1x1x2xf32>,
    } else {
    }
    return
  }
  func.func @transform_0(%arg0: i32, %arg1: i32, %arg2: memref<2xf32, #tpu.memory_space<smem>>) -> (i32, i32, i32, i32) {
    %c0_i32 = arith.constant 0 : i32
    %c0_i32_0 = arith.constant 0 : i32
    %c0_i32_1 = arith.constant 0 : i32
    return %arg0, %c0_i32, %c0_i32_0, %arg1 : i32, i32, i32, i32
  }
  func.func @transform_1(%arg0: i32, %arg1: i32, %arg2: memref<2xf32, #tpu.memory_space<smem>>) -> (i32, i32, i32) {
    %c0_i32 = arith.constant 0 : i32
    %c0_i32_0 = arith.constant 0 : i32
    return %arg0, %c0_i32, %arg1 : i32, i32, i32
  }
  func.func @transform_2(%arg0: i32, %arg1: i32, %arg2: memref<2xf32, #tpu.memory_space<smem>>) -> (i32, i32, i32) {
    %c0_i32 = arith.constant 0 : i32
    %c0_i32_0 = arith.constant 0 : i32
    %c0_i32_1 = arith.constant 0 : i32
    return %arg0, %c0_i32, %c0_i32_0 : i32, i32, i32
  }
}

</mosaic_0001>

<llo_original>
// kernel: scenes_forward.1
$region0: #{scenes_forward.1}
  #allocation0 [shape = 'u32[]', space=smem, size = 0x4, offset = 0x4, fixed_abs, tag = 'smem constant byte address 0x4 - core index']
  #allocation1 [shape = 'u32[72,128]{1,0:T(1,128)}', space=vmem, size = 0x9000, scoped, tag = 'internal scratch']
  #allocation2 [shape = 'f32[2,1536]{1,0:T(2,128)}', space=vmem, size = 0x3000, scoped, tag = 'scratch operand']
  #allocation3 [shape = 's32[1]{0}', space=sflag, size = 0x4, scoped, tag = 'scoped memory for scenes_forward.1']
  #allocation4 [shape = 'u8[512]{0}', space=smem, size = 0x200, scoped, tag = 'prefetched SMEM operand 0']
  %s0 = inlined_call_operand.vmem [shape: f32[2], index: 0, kind: input, shape index: {}]
  %s1 = inlined_call_operand.hbm [shape: f32[2,2,16,1536], index: 1, kind: input, shape index: {}]
  %s2 = inlined_call_operand.vmem [shape: f32[2,16,1536], index: 2, kind: input, shape index: {}]
  %s3 = inlined_call_operand.vmem [shape: f32[2,1,2], index: 3, kind: output, shape index: {}]
  %s4 = sld [smem:[#allocation0]]
  $region53: #{scenes_forward.1} parent=0
    _
  %s6 = ssub.s32 1, %s4
  %s7 = scalar_select 0, %s6, %s4
  %s9 = sshll.u32 %s0, 4
  %s10 = int_to_ptr.vmem [resolvable:$true] %s9
  %12 = dma.vmem_to_smem %s10, 16, [#allocation4], [#allocation3]
  %14 = dma.done [#allocation3], 16
  %15 = sfence
  $region1: #{scenes_forward.1} parent=0
    #allocation5 [shape = 'u8[393216]{0}', space=vmem, size = 0x60000, scoped, tag = 'input window, operand 1']
    #allocation6 [shape = 's32[2]{0}', space=sflag, size = 0x8, scoped, tag = 'scoped memory for scenes_forward.1']
    %16 = vsyncpa [#allocation6], 0
    %s17 = scalar_lea.sflag [#allocation6], 1
    %18 = vsyncpa %s17, 0
    loop: start=0, step=1, limit=4
    $region2: #{scenes_forward.1} parent=1 // loop_pre_header
      _
    $region3: #{scenes_forward.1} parent=1 // loop_header
      %s20 = sphi 0, %s24
      %p21 = scmp.ge.s32.totalorder %s20, 4
      %s27 = sphi 0, %s39
      %s28 = sphi 0, %s35
      %s29 = sphi 0, %s27
      %s30 = sphi 0, %s28
      %s31 = sphi 0, %s29
      %s32 = sphi 0, %s30
      %s44 = sphi 0, %s46
      %s47 = sphi 0, %s44
      %s48 = sphi 0, %s47
      %s64 = sphi 0, %s48
      %s72 = sphi 0, %s74
      %s75 = sphi 0, %s72
      %s76 = sphi 0, %s75
      %s92 = sphi 0, %s76
      %s98 = sphi 0, %s100
      %s101 = sphi 0, %s98
      %s102 = sphi 0, %s101
      %s118 = sphi 0, %s102
    $region4: #{scenes_forward.1} parent=1 // loop_header_branch
      %23 = sbr.rel (%p21) target = $region8
    $region5: #{scenes_forward.1} parent=1 // loop_body
      %s25 = ssub.s32 %s20, 1
      %s26 = ssub.s32 %s20, 2
      %s33 = sadd.s32 1, %s28
      %p34 = scmp.ge.s32.totalorder %s33, 1
      %s35 = scalar_select %p34, 0, %s33
      %s36 = sadd.s32 1, %s27
      %s37 = scalar_select %p34, %s36, %s27
      %p38 = scmp.ge.s32.totalorder %s37, 2
      %s39 = scalar_select %p38, 0, %s37
      %s40 = ssub.s32 %s27, %s39
      %s41 = ssub.s32 %s28, %s35
      %s42 = sor.u32 %s40, %s41
      %p43 = scmp.eq.s32.totalorder %s42, 0
      %s45 = sadd.s32 %s44, 1
      %s46 = scalar_select %p43, %s44, %s45
      %p49 = pneg %p43
      %p50 = scmp.eq.s32.totalorder %s20, 1
      %p51 = por %p49, %p50
      %p52 = scmp.ne.s32.totalorder %s44, %s47
      %p53 = scmp.eq.s32.totalorder %s20, 0
      %p54 = por %p52, %p53
      %p55 = scmp.ne.s32.totalorder %s44, %s47
      %p56 = scmp.eq.s32.totalorder %s25, 1
      %p57 = por %p55, %p56
      %p58 = scmp.ne.s32.totalorder %s47, %s48
      %p59 = scmp.eq.s32.totalorder %s25, 0
      %p60 = por %p58, %p59
      %p61 = scmp.ne.s32.totalorder %s47, %s48
      %p62 = scmp.eq.s32.totalorder %s26, 1
      %p63 = por %p61, %p62
      %p65 = scmp.ne.s32.totalorder %s48, %s64
      %p66 = scmp.eq.s32.totalorder %s26, 0
      %p67 = por %p65, %p66
      %s68 = ssub.s32 %s27, %s39
      %s69 = ssub.s32 %s28, %s35
      %s70 = sor.u32 %s68, %s69
      %p71 = scmp.eq.s32.totalorder %s70, 0
      %s73 = sadd.s32 %s72, 1
      %s74 = scalar_select %p71, %s72, %s73
      %p77 = pneg %p71
      %p78 = scmp.eq.s32.totalorder %s20, 1
      %p79 = por %p77, %p78
      %p80 = scmp.ne.s32.totalorder %s72, %s75
      %p81 = scmp.eq.s32.totalorder %s20, 0
      %p82 = por %p80, %p81
      %p83 = scmp.ne.s32.totalorder %s72, %s75
      %p84 = scmp.eq.s32.totalorder %s25, 1
      %p85 = por %p83, %p84
      %p86 = scmp.ne.s32.totalorder %s75, %s76
      %p87 = scmp.eq.s32.totalorder %s25, 0
      %p88 = por %p86, %p87
      %p89 = scmp.ne.s32.totalorder %s75, %s76
      %p90 = scmp.eq.s32.totalorder %s26, 1
      %p91 = por %p89, %p90
      %p93 = scmp.ne.s32.totalorder %s76, %s92
      %p94 = scmp.eq.s32.totalorder %s26, 0
      %p95 = por %p93, %p94
      %s96 = ssub.s32 %s27, %s39
      %p97 = scmp.eq.s32.totalorder %s96, 0
      %s99 = sadd.s32 %s98, 1
      %s100 = scalar_select %p97, %s98, %s99
      %p103 = pneg %p97
      %p104 = scmp.eq.s32.totalorder %s20, 1
      %p105 = por %p103, %p104
      %p106 = scmp.ne.s32.totalorder %s98, %s101
      %p107 = scmp.eq.s32.totalorder %s20, 0
      %p108 = por %p106, %p107
      %p109 = scmp.ne.s32.totalorder %s98, %s101
      %p110 = scmp.eq.s32.totalorder %s25, 1
      %p111 = por %p109, %p110
      %p112 = scmp.ne.s32.totalorder %s101, %s102
      %p113 = scmp.eq.s32.totalorder %s25, 0
      %p114 = por %p112, %p113
      %p115 = scmp.ne.s32.totalorder %s101, %s102
      %p116 = scmp.eq.s32.totalorder %s26, 1
      %p117 = por %p115, %p116
      %p119 = scmp.ne.s32.totalorder %s102, %s118
      %p120 = scmp.eq.s32.totalorder %s26, 0
      %p121 = por %p119, %p120
      %p122 = scmp.le.s32.totalorder 1, %s20
      %p123 = scmp.lt.s32.totalorder %s20, 3
      %p124 = pnand %p122, %p123
      %p125 = pneg %p124
      // Predicated region
      $region9: #{scenes_forward.1} parent=5 // pred_check
        _
      $region10: #{scenes_forward.1} parent=5 // pred_check_branch
        %127 = sbr.rel (%p124) target = $region12
      $region11: #{scenes_forward.1} parent=5 // pred_region
        %s128 = ssub.s32 %s20, 1
      $region12: #{scenes_forward.1} parent=5 // pred_fallthru
        _
      %p129 = scmp.lt.s32.totalorder %s20, 2
      // Predicated region
      $region13: #{scenes_forward.1} parent=5 // pred_check
        %p130 = pneg %p129
      $region14: #{scenes_forward.1} parent=5 // pred_check_branch
        %132 = sbr.rel (%p130) target = $region16
      $region15: #{scenes_forward.1} parent=5 // pred_region
        // Predicated region
        $region17: #{scenes_forward.1} parent=15 // pred_check
          %p133 = pneg %p54
        $region18: #{scenes_forward.1} parent=15 // pred_check_branch
          %135 = sbr.rel (%p133) target = $region20
        $region19: #{scenes_forward.1} parent=15 // pred_region
          %s136 = sand.u32 %s44, 1
          %s137 = scalar_lea.sflag [#allocation6], %s136
          %s138 = sand.u32 %s44, 1
          %s139 = smul.addr %s138, 384
          %s140 = scalar_lea.vmem [#allocation5], %s139
          %s141 = smul.u32 12, %s28
          %143 = vsyncadd %s137, 0
          %s144 = smul.addr %s27, 48
          %s145 = sadd.s32 %s141, %s144
          %s146 = smul.addr %s145, 8
          %s147 = scalar_lea.hbm %s1, %s146
          %s148 = sshll.u32 %s147, 4
          %s149 = int_to_ptr.hbm [resolvable:$true] %s148
          %s150 = sshll.u32 %s140, 4
          %s151 = int_to_ptr.vmem [resolvable:$true] %s150
          %156 = dma.hbm_to_vmem [thread:$0]  %s149, 6144, %s151, %s137, 1536, 1536, 96
        $region20: #{scenes_forward.1} parent=15 // pred_fallthru
          _
        // Predicated region
        $region21: #{scenes_forward.1} parent=15 // pred_check
          %p157 = pneg %p82
        $region22: #{scenes_forward.1} parent=15 // pred_check_branch
          %159 = sbr.rel (%p157) target = $region24
        $region23: #{scenes_forward.1} parent=15 // pred_region
          %s160 = smul.u32 12, %s28
          %p161 = scmp.lt.s32.totalorder %s27, 1
          %s162 = scalar_select %p161, %s27, 1
          %p163 = scmp.lt.s32.totalorder %s160, 11
          %s164 = scalar_select %p163, %s160, 11
          %s165 = smul.addr %s162, 24
          %s166 = sadd.s32 %s164, %s165
          %s167 = smul.addr %s166, 8
          %s168 = scalar_lea.vmem %s2, %s167
          %s169 = smul.u32 12, %s28
        $region24: #{scenes_forward.1} parent=15 // pred_fallthru
          _
      $region16: #{scenes_forward.1} parent=5 // pred_fallthru
        _
      %p170 = scmp.le.s32.totalorder 1, %s20
      %p171 = scmp.lt.s32.totalorder %s20, 3
      %p172 = pnand %p170, %p171
      %p173 = pneg %p172
      // Predicated region
      $region25: #{scenes_forward.1} parent=5 // pred_check
        _
      $region26: #{scenes_forward.1} parent=5 // pred_check_branch
        %175 = sbr.rel (%p172) target = $region28
      $region27: #{scenes_forward.1} parent=5 // pred_region
        %s176 = ssub.s32 %s20, 1
        %s177 = sand.u32 %s47, 1
        %s178 = scalar_lea.sflag [#allocation6], %s177
        %s179 = sand.u32 %s47, 1
        %s180 = smul.addr %s179, 384
        %s181 = scalar_lea.vmem [#allocation5], %s180
        // Predicated region
        $region29: #{scenes_forward.1} parent=27 // pred_check
          %p182 = pneg %p60
        $region30: #{scenes_forward.1} parent=27 // pred_check_branch
          %184 = sbr.rel (%p182) target = $region32
        $region31: #{scenes_forward.1} parent=27 // pred_region
          %186 = dma.done %s178, 6144
        $region32: #{scenes_forward.1} parent=27 // pred_fallthru
          _
        %s187 = sand.u32 %s47, 1
        %s188 = scalar_lea.sflag [#allocation6], %s187
        %s189 = sand.u32 %s47, 1
        %s190 = smul.addr %s189, 384
        %s191 = scalar_lea.vmem [#allocation5], %s190
        %p192 = pneg %p60
        %p193 = pneg %p57
        %s194 = smul.u32 12, %s30
        %p195 = scmp.lt.s32.totalorder %s29, 1
        %s196 = scalar_select %p195, %s29, 1
        %p197 = scmp.lt.s32.totalorder %s194, 11
        %s198 = scalar_select %p197, %s194, 11
        %s199 = smul.addr %s196, 24
        %s200 = sadd.s32 %s198, %s199
        %s201 = smul.addr %s200, 8
        %s202 = scalar_lea.vmem %s2, %s201
        %p203 = pneg %p88
        %p204 = pneg %p85
        %p205 = pneg %p114
        %p206 = pneg %p111
        %p207 = scmp.lt.s32.totalorder %s29, 1
        %s208 = scalar_select %p207, %s29, 1
        %s209 = scalar_lea.vmem %s3, %s208
        %s210 = smul.u32 12, %s30
        %s211 = smul.u32 12, %s30
        %p212 = scmp.lt.s32.totalorder %s29, 1
        %s213 = scalar_select %p212, %s29, 1
        %p214 = scmp.lt.s32.totalorder %s211, 11
        %s215 = scalar_select %p214, %s211, 11
        %s216 = smul.addr %s213, 24
        %s217 = sadd.s32 %s215, %s216
        %s218 = smul.addr %s217, 8
        %s219 = scalar_lea.vmem %s2, %s218
        %s220 = smul.u32 12, %s30
        %p221 = scmp.lt.s32.totalorder %s29, 1
        %s222 = scalar_select %p221, %s29, 1
        %s223 = scalar_lea.vmem %s3, %s222
        %p224 = scmp.eq.s32.totalorder %s30, 0
        // Predicated region
        $region33: #{scenes_forward.1} parent=27 // pred_check
          %p225 = pneg %p224
        $region34: #{scenes_forward.1} parent=27 // pred_check_branch
          %227 = sbr.rel (%p225) target = $region36
        $region35: #{scenes_forward.1} parent=27 // pred_region
          %228 = vst [vmem:[#allocation2] sm:$0xff] 0.0
          %229 = vst [vmem:[#allocation2 + $0x8] sm:$0xff] 0.0
          %230 = vst [vmem:[#allocation2 + $0x10] sm:$0xff] 0.0
        $region36: #{scenes_forward.1} parent=27 // pred_fallthru
          _
        %s231 = sld [smem:[#allocation4 + %s29]]
        %v232 = vld [vmem:[%s181] sm:$0xff]
        %v233 = vld [vmem:[%s181 + $0x8] sm:$0xff]
        %v234 = vld [vmem:[%s181 + $0x10] sm:$0xff]
        %v235 = vld [vmem:[%s181 + $0x18] sm:$0xff]
        %v236 = vld [vmem:[%s181 + $0x60] sm:$0xff]
        %v237 = vld [vmem:[%s181 + $0x68] sm:$0xff]
        %v238 = vld [vmem:[%s181 + $0x70] sm:$0xff]
        %v239 = vld [vmem:[%s181 + $0x78] sm:$0xff]
        %v240 = vld [vmem:[%s181 + $0xc0] sm:$0xff]
        %v241 = vld [vmem:[%s181 + $0xc8] sm:$0xff]
        %v242 = vld [vmem:[%s181 + $0xd0] sm:$0xff]
        %v243 = vld [vmem:[%s181 + $0xd8] sm:$0xff]
        %v244 = vld [vmem:[%s181 + $0x120] sm:$0xff]
        %v245 = vld [vmem:[%s181 + $0x128] sm:$0xff]
        %v246 = vld [vmem:[%s181 + $0x130] sm:$0xff]
        %v247 = vld [vmem:[%s181 + $0x138] sm:$0xff]
        %v248 = vld [vmem:[%s219] sm:$0xff]
        %v249 = vld [vmem:[%s219 + $0x8] sm:$0xff]
        %v250 = vld [vmem:[%s219 + $0x10] sm:$0xff]
        %v251 = vld [vmem:[%s219 + $0x18] sm:$0xff]
        %v252 = vld [vmem:[%s219 + $0x60] sm:$0xff]
        %v253 = vld [vmem:[%s219 + $0x68] sm:$0xff]
        %v254 = vld [vmem:[%s219 + $0x70] sm:$0xff]
        %v255 = vld [vmem:[%s219 + $0x78] sm:$0xff]
        %v256 = vmax.f32 %v232, %v236
        %v257 = vrot.slane %v256, 4
        %v258 = vmax.f32 %v256, %v257
        %v259 = vrot.slane %v258, 2
        %v260 = vmax.f32 %v258, %v259
        %v261 = vrot.slane %v260, 1
        %v262 = vmax.f32 %v260, %v261
        %v263 = vmax.f32 %v233, %v237
        %v264 = vrot.slane %v263, 4
        %v265 = vmax.f32 %v263, %v264
        %v266 = vrot.slane %v265, 2
        %v267 = vmax.f32 %v265, %v266
        %v268 = vrot.slane %v267, 1
        %v269 = vmax.f32 %v267, %v268
        %v270 = vmax.f32 %v234, %v238
        %v271 = vrot.slane %v270, 4
        %v272 = vmax.f32 %v270, %v271
        %v273 = vrot.slane %v272, 2
        %v274 = vmax.f32 %v272, %v273
        %v275 = vrot.slane %v274, 1
        %v276 = vmax.f32 %v274, %v275
        %v277 = vmax.f32 %v235, %v239
        %v278 = vrot.slane %v277, 4
        %v279 = vmax.f32 %v277, %v278
        %v280 = vrot.slane %v279, 2
        %v281 = vmax.f32 %v279, %v280
        %v282 = vrot.slane %v281, 1
        %v283 = vmax.f32 %v281, %v282
        %vm284 = vcmp.eq.f32.partialorder %v232, %v262
        %vm285 = vcmp.eq.f32.partialorder %v233, %v269
        %vm286 = vcmp.eq.f32.partialorder %v234, %v276
        %vm287 = vcmp.eq.f32.partialorder %v235, %v283
        %vm288 = vcmp.eq.f32.partialorder %v236, %v262
        %vm289 = vcmp.eq.f32.partialorder %v237, %v269
        %vm290 = vcmp.eq.f32.partialorder %v238, %v276
        %vm291 = vcmp.eq.f32.partialorder %v239, %v283
        %v292 = vstv %s231
        %vm293 = vcmp.gt.f32.partialorder %v232, %v292
        %vm294 = vcmp.gt.f32.partialorder %v233, %v292
        %vm295 = vcmp.gt.f32.partialorder %v234, %v292
        %vm296 = vcmp.gt.f32.partialorder %v235, %v292
        %vm297 = vcmp.gt.f32.partialorder %v236, %v292
        %vm298 = vcmp.gt.f32.partialorder %v237, %v292
        %vm299 = vcmp.gt.f32.partialorder %v238, %v292
        %vm300 = vcmp.gt.f32.partialorder %v239, %v292
        %vm301 = vmand %vm284, %vm293
        %vm302 = vmand %vm285, %vm294
        %vm303 = vmand %vm286, %vm295
        %vm304 = vmand %vm287, %vm296
        %vm305 = vmand %vm288, %vm297
        %vm306 = vmand %vm289, %vm298
        %vm307 = vmand %vm290, %vm299
        %vm308 = vmand %vm291, %vm300
        %v309 = vsub.f32 %v232, %v248
        %v310 = vsub.f32 %v233, %v249
        %v311 = vsub.f32 %v234, %v250
        %v312 = vsub.f32 %v235, %v251
        %v313 = vsub.f32 %v236, %v252
        %v314 = vsub.f32 %v237, %v253
        %v315 = vsub.f32 %v238, %v254
        %v316 = vsub.f32 %v239, %v255
        %v317 = vsub.f32 %v240, %v248
        %v318 = vsub.f32 %v241, %v249
        %v319 = vsub.f32 %v242, %v250
        %v320 = vsub.f32 %v243, %v251
        %v321 = vsub.f32 %v244, %v252
        %v322 = vsub.f32 %v245, %v253
        %v323 = vsub.f32 %v246, %v254
        %v324 = vsub.f32 %v247, %v255
        %v325 = vsel %vm301, 1, 0
        %v326 = vsel %vm302, 1, 0
        %v327 = vsel %vm303, 1, 0
        %v328 = vsel %vm304, 1, 0
        %v329 = vsel %vm305, 1, 0
        %v330 = vsel %vm306, 1, 0
        %v331 = vsel %vm307, 1, 0
        %v332 = vsel %vm308, 1, 0
        %vm333 = vcmp.eq.s32.totalorder %v325, 1
        %vm334 = vcmp.eq.s32.totalorder %v326, 1
        %vm335 = vcmp.eq.s32.totalorder %v327, 1
        %vm336 = vcmp.eq.s32.totalorder %v328, 1
        %vm337 = vcmp.eq.s32.totalorder %v329, 1
        %vm338 = vcmp.eq.s32.totalorder %v330, 1
        %vm339 = vcmp.eq.s32.totalorder %v331, 1
        %vm340 = vcmp.eq.s32.totalorder %v332, 1
        %v341 = vsel %vm333, %v309, 0.0
        %v342 = vsel %vm334, %v310, 0.0
        %v343 = vsel %vm335, %v311, 0.0
        %v344 = vsel %vm336, %v312, 0.0
        %v345 = vsel %vm337, %v313, 0.0
        %v346 = vsel %vm338, %v314, 0.0
        %v347 = vsel %vm339, %v315, 0.0
        %v348 = vsel %vm340, %v316, 0.0
        %v349 = vsel %vm333, %v317, 0.0
        %v350 = vsel %vm334, %v318, 0.0
        %v351 = vsel %vm335, %v319, 0.0
        %v352 = vsel %vm336, %v320, 0.0
        %v353 = vsel %vm337, %v321, 0.0
        %v354 = vsel %vm338, %v322, 0.0
        %v355 = vsel %vm339, %v323, 0.0
        %v356 = vsel %vm340, %v324, 0.0
        %v357 = vld [vmem:[#allocation2] sm:$0xff]
        %v358 = vmul.f32 %v341, %v341
        %v359 = vmul.f32 %v342, %v342
        %v360 = vmul.f32 %v343, %v343
        %v361 = vmul.f32 %v344, %v344
        %v362 = vmul.f32 %v345, %v345
        %v363 = vmul.f32 %v346, %v346
        %v364 = vmul.f32 %v347, %v347
        %v365 = vmul.f32 %v348, %v348
        %v366 = vmul.f32 %v349, %v349
        %v367 = vmul.f32 %v350, %v350
        %v368 = vmul.f32 %v351, %v351
        %v369 = vmul.f32 %v352, %v352
        %v370 = vmul.f32 %v353, %v353
        %v371 = vmul.f32 %v354, %v354
        %v372 = vmul.f32 %v355, %v355
        %v373 = vmul.f32 %v356, %v356
        %v374 = vadd.f32 %v358, %v362
        %v375 = vrot.slane %v374, 4
        %v376 = vadd.f32 %v374, %v375
        %v377 = vrot.slane %v376, 2
        %v378 = vadd.f32 %v376, %v377
        %v379 = vrot.slane %v378, 1
        %v380 = vadd.f32 %v378, %v379
        %v381 = vadd.f32 %v359, %v363
        %v382 = vrot.slane %v381, 4
        %v383 = vadd.f32 %v381, %v382
        %v384 = vrot.slane %v383, 2
        %v385 = vadd.f32 %v383, %v384
        %v386 = vrot.slane %v385, 1
        %v387 = vadd.f32 %v385, %v386
        %v388 = vadd.f32 %v360, %v364
        %v389 = vrot.slane %v388, 4
        %v390 = vadd.f32 %v388, %v389
        %v391 = vrot.slane %v390, 2
        %v392 = vadd.f32 %v390, %v391
        %v393 = vrot.slane %v392, 1
        %v394 = vadd.f32 %v392, %v393
        %v395 = vadd.f32 %v361, %v365
        %v396 = vrot.slane %v395, 4
        %v397 = vadd.f32 %v395, %v396
        %v398 = vrot.slane %v397, 2
        %v399 = vadd.f32 %v397, %v398
        %v400 = vrot.slane %v399, 1
        %v401 = vadd.f32 %v399, %v400
        %v402 = vadd.f32 %v366, %v370
        %v403 = vrot.slane %v402, 4
        %v404 = vadd.f32 %v402, %v403
        %v405 = vrot.slane %v404, 2
        %v406 = vadd.f32 %v404, %v405
        %v407 = vrot.slane %v406, 1
        %v408 = vadd.f32 %v406, %v407
        %v409 = vadd.f32 %v367, %v371
        %v410 = vrot.slane %v409, 4
        %v411 = vadd.f32 %v409, %v410
        %v412 = vrot.slane %v411, 2
        %v413 = vadd.f32 %v411, %v412
        %v414 = vrot.slane %v413, 1
        %v415 = vadd.f32 %v413, %v414
        %v416 = vadd.f32 %v368, %v372
        %v417 = vrot.slane %v416, 4
        %v418 = vadd.f32 %v416, %v417
        %v419 = vrot.slane %v418, 2
        %v420 = vadd.f32 %v418, %v419
        %v421 = vrot.slane %v420, 1
        %v422 = vadd.f32 %v420, %v421
        %v423 = vadd.f32 %v369, %v373
        %v424 = vrot.slane %v423, 4
        %v425 = vadd.f32 %v423, %v424
        %v426 = vrot.slane %v425, 2
        %v427 = vadd.f32 %v425, %v426
        %v428 = vrot.slane %v427, 1
        %v429 = vadd.f32 %v427, %v428
        %v438 = vrot.slane %v387, 6
        %v439 = vrot.slane %v394, 4
        %v440 = vrot.slane %v401, 2
        %v441 = vrot.slane %v415, 6
        %v442 = vrot.slane %v422, 4
        %v443 = vrot.slane %v429, 2
        %vm444 = vcmask 1041408
        %v445 = vsel %vm444, %v380, %v438
        %vm446 = vcmask 1045508
        %v447 = vsel %vm446, %v439, %v440
        %vm448 = vcmask 1043456
        %v449 = vsel %vm448, %v445, %v447
        %v450 = vsel %vm444, %v408, %v441
        %v451 = vsel %vm446, %v442, %v443
        %v452 = vsel %vm448, %v450, %v451
        %vm453 = vcmask 1044484
        %v454 = vsel %vm453, %v449, %v449
        %vm455 = vcmask 1046534
        %v456 = vsel %vm455, %v449, %v454
        %v457 = vrot.slane %v452, 7
        %vm458 = vcmask 1041409
        %v459 = vsel %vm458, %v457, %v456
        %vm460 = vcmask 1043459
        %v461 = vsel %vm460, %v457, %v459
        %vm462 = vcmask 1045509
        %v463 = vsel %vm462, %v457, %v461
        %vm464 = vcmask 1047559
        %v465 = vsel %vm464, %v457, %v463
        %v467 = vadd.f32 %v357, %v465
        %468 = vst [vmem:[#allocation2] sm:$0xff] %v467
        %s469 = scalar_lea.vmem %s181, 32 [#allocation5]
        %v470 = vld [vmem:[%s469] sm:$0xff]
        %v471 = vld [vmem:[%s469 + $0x8] sm:$0xff]
        %v472 = vld [vmem:[%s469 + $0x10] sm:$0xff]
        %v473 = vld [vmem:[%s469 + $0x18] sm:$0xff]
        %v474 = vld [vmem:[%s469 + $0x60] sm:$0xff]
        %v475 = vld [vmem:[%s469 + $0x68] sm:$0xff]
        %v476 = vld [vmem:[%s469 + $0x70] sm:$0xff]
        %v477 = vld [vmem:[%s469 + $0x78] sm:$0xff]
        %v478 = vld [vmem:[%s469 + $0xc0] sm:$0xff]
        %v479 = vld [vmem:[%s469 + $0xc8] sm:$0xff]
        %v480 = vld [vmem:[%s469 + $0xd0] sm:$0xff]
        %v481 = vld [vmem:[%s469 + $0xd8] sm:$0xff]
        %v482 = vld [vmem:[%s469 + $0x120] sm:$0xff]
        %v483 = vld [vmem:[%s469 + $0x128] sm:$0xff]
        %v484 = vld [vmem:[%s469 + $0x130] sm:$0xff]
        %v485 = vld [vmem:[%s469 + $0x138] sm:$0xff]
        %s486 = scalar_lea.vmem %s219, 32
        %v487 = vld [vmem:[%s486] sm:$0xff]
        %v488 = vld [vmem:[%s486 + $0x8] sm:$0xff]
        %v489 = vld [vmem:[%s486 + $0x10] sm:$0xff]
        %v490 = vld [vmem:[%s486 + $0x18] sm:$0xff]
        %v491 = vld [vmem:[%s486 + $0x60] sm:$0xff]
        %v492 = vld [vmem:[%s486 + $0x68] sm:$0xff]
        %v493 = vld [vmem:[%s486 + $0x70] sm:$0xff]
        %v494 = vld [vmem:[%s486 + $0x78] sm:$0xff]
        %v495 = vmax.f32 %v470, %v474
        %v496 = vrot.slane %v495, 4
        %v497 = vmax.f32 %v495, %v496
        %v498 = vrot.slane %v497, 2
        %v499 = vmax.f32 %v497, %v498
        %v500 = vrot.slane %v499, 1
        %v501 = vmax.f32 %v499, %v500
        %v502 = vmax.f32 %v471, %v475
        %v503 = vrot.slane %v502, 4
        %v504 = vmax.f32 %v502, %v503
        %v505 = vrot.slane %v504, 2
        %v506 = vmax.f32 %v504, %v505
        %v507 = vrot.slane %v506, 1
        %v508 = vmax.f32 %v506, %v507
        %v509 = vmax.f32 %v472, %v476
        %v510 = vrot.slane %v509, 4
        %v511 = vmax.f32 %v509, %v510
        %v512 = vrot.slane %v511, 2
        %v513 = vmax.f32 %v511, %v512
        %v514 = vrot.slane %v513, 1
        %v515 = vmax.f32 %v513, %v514
        %v516 = vmax.f32 %v473, %v477
        %v517 = vrot.slane %v516, 4
        %v518 = vmax.f32 %v516, %v517
        %v519 = vrot.slane %v518, 2
        %v520 = vmax.f32 %v518, %v519
        %v521 = vrot.slane %v520, 1
        %v522 = vmax.f32 %v520, %v521
        %vm523 = vcmp.eq.f32.partialorder %v470, %v501
        %vm524 = vcmp.eq.f32.partialorder %v471, %v508
        %vm525 = vcmp.eq.f32.partialorder %v472, %v515
        %vm526 = vcmp.eq.f32.partialorder %v473, %v522
        %vm527 = vcmp.eq.f32.partialorder %v474, %v501
        %vm528 = vcmp.eq.f32.partialorder %v475, %v508
        %vm529 = vcmp.eq.f32.partialorder %v476, %v515
        %vm530 = vcmp.eq.f32.partialorder %v477, %v522
        %vm531 = vcmp.gt.f32.partialorder %v470, %v292
        %vm532 = vcmp.gt.f32.partialorder %v471, %v292
        %vm533 = vcmp.gt.f32.partialorder %v472, %v292
        %vm534 = vcmp.gt.f32.partialorder %v473, %v292
        %vm535 = vcmp.gt.f32.partialorder %v474, %v292
        %vm536 = vcmp.gt.f32.partialorder %v475, %v292
        %vm537 = vcmp.gt.f32.partialorder %v476, %v292
        %vm538 = vcmp.gt.f32.partialorder %v477, %v292
        %vm539 = vmand %vm523, %vm531
        %vm540 = vmand %vm524, %vm532
        %vm541 = vmand %vm525, %vm533
        %vm542 = vmand %vm526, %vm534
        %vm543 = vmand %vm527, %vm535
        %vm544 = vmand %vm528, %vm536
        %vm545 = vmand %vm529, %vm537
        %vm546 = vmand %vm530, %vm538
        %v547 = vsub.f32 %v470, %v487
        %v548 = vsub.f32 %v471, %v488
        %v549 = vsub.f32 %v472, %v489
        %v550 = vsub.f32 %v473, %v490
        %v551 = vsub.f32 %v474, %v491
        %v552 = vsub.f32 %v475, %v492
        %v553 = vsub.f32 %v476, %v493
        %v554 = vsub.f32 %v477, %v494
        %v555 = vsub.f32 %v478, %v487
        %v556 = vsub.f32 %v479, %v488
        %v557 = vsub.f32 %v480, %v489
        %v558 = vsub.f32 %v481, %v490
        %v559 = vsub.f32 %v482, %v491
        %v560 = vsub.f32 %v483, %v492
        %v561 = vsub.f32 %v484, %v493
        %v562 = vsub.f32 %v485, %v494
        %v563 = vsel %vm539, 1, 0
        %v564 = vsel %vm540, 1, 0
        %v565 = vsel %vm541, 1, 0
        %v566 = vsel %vm542, 1, 0
        %v567 = vsel %vm543, 1, 0
        %v568 = vsel %vm544, 1, 0
        %v569 = vsel %vm545, 1, 0
        %v570 = vsel %vm546, 1, 0
        %vm571 = vcmp.eq.s32.totalorder %v563, 1
        %vm572 = vcmp.eq.s32.totalorder %v564, 1
        %vm573 = vcmp.eq.s32.totalorder %v565, 1
        %vm574 = vcmp.eq.s32.totalorder %v566, 1
        %vm575 = vcmp.eq.s32.totalorder %v567, 1
        %vm576 = vcmp.eq.s32.totalorder %v568, 1
        %vm577 = vcmp.eq.s32.totalorder %v569, 1
        %vm578 = vcmp.eq.s32.totalorder %v570, 1
        %v579 = vsel %vm571, %v547, 0.0
        %v580 = vsel %vm572, %v548, 0.0
        %v581 = vsel %vm573, %v549, 0.0
        %v582 = vsel %vm574, %v550, 0.0
        %v583 = vsel %vm575, %v551, 0.0
        %v584 = vsel %vm576, %v552, 0.0
        %v585 = vsel %vm577, %v553, 0.0
        %v586 = vsel %vm578, %v554, 0.0
        %v587 = vsel %vm571, %v555, 0.0
        %v588 = vsel %vm572, %v556, 0.0
        %v589 = vsel %vm573, %v557, 0.0
        %v590 = vsel %vm574, %v558, 0.0
        %v591 = vsel %vm575, %v559, 0.0
        %v592 = vsel %vm576, %v560, 0.0
        %v593 = vsel %vm577, %v561, 0.0
        %v594 = vsel %vm578, %v562, 0.0
        %s595 = scalar_lea.vmem [#allocation2], 8
        %v596 = vld [vmem:[%s595] sm:$0xff]
        %v597 = vmul.f32 %v579, %v579
        %v598 = vmul.f32 %v580, %v580
        %v599 = vmul.f32 %v581, %v581
        %v600 = vmul.f32 %v582, %v582
        %v601 = vmul.f32 %v583, %v583
        %v602 = vmul.f32 %v584, %v584
        %v603 = vmul.f32 %v585, %v585
        %v604 = vmul.f32 %v586, %v586
        %v605 = vmul.f32 %v587, %v587
        %v606 = vmul.f32 %v588, %v588
        %v607 = vmul.f32 %v589, %v589
        %v608 = vmul.f32 %v590, %v590
        %v609 = vmul.f32 %v591, %v591
        %v610 = vmul.f32 %v592, %v592
        %v611 = vmul.f32 %v593, %v593
        %v612 = vmul.f32 %v594, %v594
        %v613 = vadd.f32 %v597, %v601
        %v614 = vrot.slane %v613, 4
        %v615 = vadd.f32 %v613, %v614
        %v616 = vrot.slane %v615, 2
        %v617 = vadd.f32 %v615, %v616
        %v618 = vrot.slane %v617, 1
        %v619 = vadd.f32 %v617, %v618
        %v620 = vadd.f32 %v598, %v602
        %v621 = vrot.slane %v620, 4
        %v622 = vadd.f32 %v620, %v621
        %v623 = vrot.slane %v622, 2
        %v624 = vadd.f32 %v622, %v623
        %v625 = vrot.slane %v624, 1
        %v626 = vadd.f32 %v624, %v625
        %v627 = vadd.f32 %v599, %v603
        %v628 = vrot.slane %v627, 4
        %v629 = vadd.f32 %v627, %v628
        %v630 = vrot.slane %v629, 2
        %v631 = vadd.f32 %v629, %v630
        %v632 = vrot.slane %v631, 1
        %v633 = vadd.f32 %v631, %v632
        %v634 = vadd.f32 %v600, %v604
        %v635 = vrot.slane %v634, 4
        %v636 = vadd.f32 %v634, %v635
        %v637 = vrot.slane %v636, 2
        %v638 = vadd.f32 %v636, %v637
        %v639 = vrot.slane %v638, 1
        %v640 = vadd.f32 %v638, %v639
        %v641 = vadd.f32 %v605, %v609
        %v642 = vrot.slane %v641, 4
        %v643 = vadd.f32 %v641, %v642
        %v644 = vrot.slane %v643, 2
        %v645 = vadd.f32 %v643, %v644
        %v646 = vrot.slane %v645, 1
        %v647 = vadd.f32 %v645, %v646
        %v648 = vadd.f32 %v606, %v610
        %v649 = vrot.slane %v648, 4
        %v650 = vadd.f32 %v648, %v649
        %v651 = vrot.slane %v650, 2
        %v652 = vadd.f32 %v650, %v651
        %v653 = vrot.slane %v652, 1
        %v654 = vadd.f32 %v652, %v653
        %v655 = vadd.f32 %v607, %v611
        %v656 = vrot.slane %v655, 4
        %v657 = vadd.f32 %v655, %v656
        %v658 = vrot.slane %v657, 2
        %v659 = vadd.f32 %v657, %v658
        %v660 = vrot.slane %v659, 1
        %v661 = vadd.f32 %v659, %v660
        %v662 = vadd.f32 %v608, %v612
        %v663 = vrot.slane %v662, 4
        %v664 = vadd.f32 %v662, %v663
        %v665 = vrot.slane %v664, 2
        %v666 = vadd.f32 %v664, %v665
        %v667 = vrot.slane %v666, 1
        %v668 = vadd.f32 %v666, %v667
        %v677 = vrot.slane %v626, 6
        %v678 = vrot.slane %v633, 4
        %v679 = vrot.slane %v640, 2
        %v680 = vrot.slane %v654, 6
        %v681 = vrot.slane %v661, 4
        %v682 = vrot.slane %v668, 2
        %v683 = vsel %vm444, %v619, %v677
        %v684 = vsel %vm446, %v678, %v679
        %v685 = vsel %vm448, %v683, %v684
        %v686 = vsel %vm444, %v647, %v680
        %v687 = vsel %vm446, %v681, %v682
        %v688 = vsel %vm448, %v686, %v687
        %v689 = vsel %vm453, %v685, %v685
        %v690 = vsel %vm455, %v685, %v689
        %v691 = vrot.slane %v688, 7
        %v692 = vsel %vm458, %v691, %v690
        %v693 = vsel %vm460, %v691, %v692
        %v694 = vsel %vm462, %v691, %v693
        %v695 = vsel %vm464, %v691, %v694
        %v697 = vadd.f32 %v596, %v695
        %698 = vst [vmem:[%s595] sm:$0xff] %v697
        %s699 = scalar_lea.vmem %s181, 64 [#allocation5]
        %v700 = vld [vmem:[%s699] sm:$0xff]
        %v701 = vld [vmem:[%s699 + $0x8] sm:$0xff]
        %v702 = vld [vmem:[%s699 + $0x10] sm:$0xff]
        %v703 = vld [vmem:[%s699 + $0x18] sm:$0xff]
        %v704 = vld [vmem:[%s699 + $0x60] sm:$0xff]
        %v705 = vld [vmem:[%s699 + $0x68] sm:$0xff]
        %v706 = vld [vmem:[%s699 + $0x70] sm:$0xff]
        %v707 = vld [vmem:[%s699 + $0x78] sm:$0xff]
        %v708 = vld [vmem:[%s699 + $0xc0] sm:$0xff]
        %v709 = vld [vmem:[%s699 + $0xc8] sm:$0xff]
        %v710 = vld [vmem:[%s699 + $0xd0] sm:$0xff]
        %v711 = vld [vmem:[%s699 + $0xd8] sm:$0xff]
        %v712 = vld [vmem:[%s699 + $0x120] sm:$0xff]
        %v713 = vld [vmem:[%s699 + $0x128] sm:$0xff]
        %v714 = vld [vmem:[%s699 + $0x130] sm:$0xff]
        %v715 = vld [vmem:[%s699 + $0x138] sm:$0xff]
        %s716 = scalar_lea.vmem %s219, 64
        %v717 = vld [vmem:[%s716] sm:$0xff]
        %v718 = vld [vmem:[%s716 + $0x8] sm:$0xff]
        %v719 = vld [vmem:[%s716 + $0x10] sm:$0xff]
        %v720 = vld [vmem:[%s716 + $0x18] sm:$0xff]
        %v721 = vld [vmem:[%s716 + $0x60] sm:$0xff]
        %v722 = vld [vmem:[%s716 + $0x68] sm:$0xff]
        %v723 = vld [vmem:[%s716 + $0x70] sm:$0xff]
        %v724 = vld [vmem:[%s716 + $0x78] sm:$0xff]
        %v725 = vmax.f32 %v700, %v704
        %v726 = vrot.slane %v725, 4
        %v727 = vmax.f32 %v725, %v726
        %v728 = vrot.slane %v727, 2
        %v729 = vmax.f32 %v727, %v728
        %v730 = vrot.slane %v729, 1
        %v731 = vmax.f32 %v729, %v730
        %v732 = vmax.f32 %v701, %v705
        %v733 = vrot.slane %v732, 4
        %v734 = vmax.f32 %v732, %v733
        %v735 = vrot.slane %v734, 2
        %v736 = vmax.f32 %v734, %v735
        %v737 = vrot.slane %v736, 1
        %v738 = vmax.f32 %v736, %v737
        %v739 = vmax.f32 %v702, %v706
        %v740 = vrot.slane %v739, 4
        %v741 = vmax.f32 %v739, %v740
        %v742 = vrot.slane %v741, 2
        %v743 = vmax.f32 %v741, %v742
        %v744 = vrot.slane %v743, 1
        %v745 = vmax.f32 %v743, %v744
        %v746 = vmax.f32 %v703, %v707
        %v747 = vrot.slane %v746, 4
        %v748 = vmax.f32 %v746, %v747
        %v749 = vrot.slane %v748, 2
        %v750 = vmax.f32 %v748, %v749
        %v751 = vrot.slane %v750, 1
        %v752 = vmax.f32 %v750, %v751
        %vm753 = vcmp.eq.f32.partialorder %v700, %v731
        %vm754 = vcmp.eq.f32.partialorder %v701, %v738
        %vm755 = vcmp.eq.f32.partialorder %v702, %v745
        %vm756 = vcmp.eq.f32.partialorder %v703, %v752
        %vm757 = vcmp.eq.f32.partialorder %v704, %v731
        %vm758 = vcmp.eq.f32.partialorder %v705, %v738
        %vm759 = vcmp.eq.f32.partialorder %v706, %v745
        %vm760 = vcmp.eq.f32.partialorder %v707, %v752
        %vm761 = vcmp.gt.f32.partialorder %v700, %v292
        %vm762 = vcmp.gt.f32.partialorder %v701, %v292
        %vm763 = vcmp.gt.f32.partialorder %v702, %v292
        %vm764 = vcmp.gt.f32.partialorder %v703, %v292
        %vm765 = vcmp.gt.f32.partialorder %v704, %v292
        %vm766 = vcmp.gt.f32.partialorder %v705, %v292
        %vm767 = vcmp.gt.f32.partialorder %v706, %v292
        %vm768 = vcmp.gt.f32.partialorder %v707, %v292
        %vm769 = vmand %vm753, %vm761
        %vm770 = vmand %vm754, %vm762
        %vm771 = vmand %vm755, %vm763
        %vm772 = vmand %vm756, %vm764
        %vm773 = vmand %vm757, %vm765
        %vm774 = vmand %vm758, %vm766
        %vm775 = vmand %vm759, %vm767
        %vm776 = vmand %vm760, %vm768
        %v777 = vsub.f32 %v700, %v717
        %v778 = vsub.f32 %v701, %v718
        %v779 = vsub.f32 %v702, %v719
        %v780 = vsub.f32 %v703, %v720
        %v781 = vsub.f32 %v704, %v721
        %v782 = vsub.f32 %v705, %v722
        %v783 = vsub.f32 %v706, %v723
        %v784 = vsub.f32 %v707, %v724
        %v785 = vsub.f32 %v708, %v717
        %v786 = vsub.f32 %v709, %v718
        %v787 = vsub.f32 %v710, %v719
        %v788 = vsub.f32 %v711, %v720
        %v789 = vsub.f32 %v712, %v721
        %v790 = vsub.f32 %v713, %v722
        %v791 = vsub.f32 %v714, %v723
        %v792 = vsub.f32 %v715, %v724
        %v793 = vsel %vm769, 1, 0
        %v794 = vsel %vm770, 1, 0
        %v795 = vsel %vm771, 1, 0
        %v796 = vsel %vm772, 1, 0
        %v797 = vsel %vm773, 1, 0
        %v798 = vsel %vm774, 1, 0
        %v799 = vsel %vm775, 1, 0
        %v800 = vsel %vm776, 1, 0
        %vm801 = vcmp.eq.s32.totalorder %v793, 1
        %vm802 = vcmp.eq.s32.totalorder %v794, 1
        %vm803 = vcmp.eq.s32.totalorder %v795, 1
        %vm804 = vcmp.eq.s32.totalorder %v796, 1
        %vm805 = vcmp.eq.s32.totalorder %v797, 1
        %vm806 = vcmp.eq.s32.totalorder %v798, 1
        %vm807 = vcmp.eq.s32.totalorder %v799, 1
        %vm808 = vcmp.eq.s32.totalorder %v800, 1
        %v809 = vsel %vm801, %v777, 0.0
        %v810 = vsel %vm802, %v778, 0.0
        %v811 = vsel %vm803, %v779, 0.0
        %v812 = vsel %vm804, %v780, 0.0
        %v813 = vsel %vm805, %v781, 0.0
        %v814 = vsel %vm806, %v782, 0.0
        %v815 = vsel %vm807, %v783, 0.0
        %v816 = vsel %vm808, %v784, 0.0
        %v817 = vsel %vm801, %v785, 0.0
        %v818 = vsel %vm802, %v786, 0.0
        %v819 = vsel %vm803, %v787, 0.0
        %v820 = vsel %vm804, %v788, 0.0
        %v821 = vsel %vm805, %v789, 0.0
        %v822 = vsel %vm806, %v790, 0.0
        %v823 = vsel %vm807, %v791, 0.0
        %v824 = vsel %vm808, %v792, 0.0
        %s825 = scalar_lea.vmem [#allocation2], 16
        %v826 = vld [vmem:[%s825] sm:$0xff]
        %v827 = vmul.f32 %v809, %v809
        %v828 = vmul.f32 %v810, %v810
        %v829 = vmul.f32 %v811, %v811
        %v830 = vmul.f32 %v812, %v812
        %v831 = vmul.f32 %v813, %v813
        %v832 = vmul.f32 %v814, %v814
        %v833 = vmul.f32 %v815, %v815
        %v834 = vmul.f32 %v816, %v816
        %v835 = vmul.f32 %v817, %v817
        %v836 = vmul.f32 %v818, %v818
        %v837 = vmul.f32 %v819, %v819
        %v838 = vmul.f32 %v820, %v820
        %v839 = vmul.f32 %v821, %v821
        %v840 = vmul.f32 %v822, %v822
        %v841 = vmul.f32 %v823, %v823
        %v842 = vmul.f32 %v824, %v824
        %v843 = vadd.f32 %v827, %v831
        %v844 = vrot.slane %v843, 4
        %v845 = vadd.f32 %v843, %v844
        %v846 = vrot.slane %v845, 2
        %v847 = vadd.f32 %v845, %v846
        %v848 = vrot.slane %v847, 1
        %v849 = vadd.f32 %v847, %v848
        %v850 = vadd.f32 %v828, %v832
        %v851 = vrot.slane %v850, 4
        %v852 = vadd.f32 %v850, %v851
        %v853 = vrot.slane %v852, 2
        %v854 = vadd.f32 %v852, %v853
        %v855 = vrot.slane %v854, 1
        %v856 = vadd.f32 %v854, %v855
        %v857 = vadd.f32 %v829, %v833
        %v858 = vrot.slane %v857, 4
        %v859 = vadd.f32 %v857, %v858
        %v860 = vrot.slane %v859, 2
        %v861 = vadd.f32 %v859, %v860
        %v862 = vrot.slane %v861, 1
        %v863 = vadd.f32 %v861, %v862
        %v864 = vadd.f32 %v830, %v834
        %v865 = vrot.slane %v864, 4
        %v866 = vadd.f32 %v864, %v865
        %v867 = vrot.slane %v866, 2
        %v868 = vadd.f32 %v866, %v867
        %v869 = vrot.slane %v868, 1
        %v870 = vadd.f32 %v868, %v869
        %v871 = vadd.f32 %v835, %v839
        %v872 = vrot.slane %v871, 4
        %v873 = vadd.f32 %v871, %v872
        %v874 = vrot.slane %v873, 2
        %v875 = vadd.f32 %v873, %v874
        %v876 = vrot.slane %v875, 1
        %v877 = vadd.f32 %v875, %v876
        %v878 = vadd.f32 %v836, %v840
        %v879 = vrot.slane %v878, 4
        %v880 = vadd.f32 %v878, %v879
        %v881 = vrot.slane %v880, 2
        %v882 = vadd.f32 %v880, %v881
        %v883 = vrot.slane %v882, 1
        %v884 = vadd.f32 %v882, %v883
        %v885 = vadd.f32 %v837, %v841
        %v886 = vrot.slane %v885, 4
        %v887 = vadd.f32 %v885, %v886
        %v888 = vrot.slane %v887, 2
        %v889 = vadd.f32 %v887, %v888
        %v890 = vrot.slane %v889, 1
        %v891 = vadd.f32 %v889, %v890
        %v892 = vadd.f32 %v838, %v842
        %v893 = vrot.slane %v892, 4
        %v894 = vadd.f32 %v892, %v893
        %v895 = vrot.slane %v894, 2
        %v896 = vadd.f32 %v894, %v895
        %v897 = vrot.slane %v896, 1
        %v898 = vadd.f32 %v896, %v897
        %v907 = vrot.slane %v856, 6
        %v908 = vrot.slane %v863, 4
        %v909 = vrot.slane %v870, 2
        %v910 = vrot.slane %v884, 6
        %v911 = vrot.slane %v891, 4
        %v912 = vrot.slane %v898, 2
        %v913 = vsel %vm444, %v849, %v907
        %v914 = vsel %vm446, %v908, %v909
        %v915 = vsel %vm448, %v913, %v914
        %v916 = vsel %vm444, %v877, %v910
        %v917 = vsel %vm446, %v911, %v912
        %v918 = vsel %vm448, %v916, %v917
        %v919 = vsel %vm453, %v915, %v915
        %v920 = vsel %vm455, %v915, %v919
        %v921 = vrot.slane %v918, 7
        %v922 = vsel %vm458, %v921, %v920
        %v923 = vsel %vm460, %v921, %v922
        %v924 = vsel %vm462, %v921, %v923
        %v925 = vsel %vm464, %v921, %v924
        %v927 = vadd.f32 %v826, %v925
        %928 = vst [vmem:[%s825] sm:$0xff] %v927
        // Predicated region
        $region37: #{scenes_forward.1} parent=27 // pred_check
          %p929 = pneg %p224
        $region38: #{scenes_forward.1} parent=27 // pred_check_branch
          %931 = sbr.rel (%p929) target = $region40
        $region39: #{scenes_forward.1} parent=27 // pred_region
          %v932 = vld [vmem:[#allocation2] sm:$0xff]
          %v933 = vld [vmem:[#allocation2 + $0x8] sm:$0xff]
          %v934 = vld [vmem:[#allocation2 + $0x10] sm:$0xff]
          %938 = vst [vmem:[#allocation1] ss:$4 sm:$0xff] %v932
          %s939 = scalar_lea.vmem [#allocation1], 32
          %940 = vst [vmem:[%s939] ss:$4 sm:$0xff] %v933
          %v941 = vld.sshfl [vmem:[#allocation1] sm:$0xff pattern:$0x73625140]
          %v942 = vld.sshfl [vmem:[#allocation1 + $0x8] sm:$0xff pattern:$0x73625140]
          %v943 = vld.sshfl [vmem:[#allocation1 + $0x10] sm:$0xff pattern:$0x73625140]
          %v944 = vld.sshfl [vmem:[#allocation1 + $0x18] sm:$0xff pattern:$0x73625140]
          %v945 = vld.sshfl [vmem:[#allocation1 + $0x20] sm:$0xff pattern:$0x73625140]
          %v946 = vld.sshfl [vmem:[#allocation1 + $0x28] sm:$0xff pattern:$0x73625140]
          %v947 = vld.sshfl [vmem:[#allocation1 + $0x30] sm:$0xff pattern:$0x73625140]
          %v948 = vld.sshfl [vmem:[#allocation1 + $0x38] sm:$0xff pattern:$0x73625140]
          %949 = vst [vmem:[#allocation1] ss:$4 sm:$0xff] %v934
          %v950 = vld.sshfl [vmem:[#allocation1] sm:$0xff pattern:$0x73625140]
          %v951 = vld.sshfl [vmem:[#allocation1 + $0x8] sm:$0xff pattern:$0x73625140]
          %v952 = vld.sshfl [vmem:[#allocation1 + $0x10] sm:$0xff pattern:$0x73625140]
          %v953 = vld.sshfl [vmem:[#allocation1 + $0x18] sm:$0xff pattern:$0x73625140]
          %v966 = vsel %vm444, %v941, 0.0
          %v967 = vsel %vm444, %v942, 0.0
          %v968 = vadd.f32 %v966, %v967
          %v969 = vsel %vm444, %v943, 0.0
          %v970 = vadd.f32 %v968, %v969
          %v971 = vsel %vm444, %v944, 0.0
          %v972 = vadd.f32 %v970, %v971
          %v973 = vsel %vm444, %v945, 0.0
          %v974 = vadd.f32 %v972, %v973
          %v975 = vsel %vm444, %v946, 0.0
          %v976 = vadd.f32 %v974, %v975
          %v977 = vsel %vm444, %v947, 0.0
          %v978 = vadd.f32 %v976, %v977
          %v979 = vsel %vm444, %v948, 0.0
          %v980 = vadd.f32 %v978, %v979
          %v981 = vsel %vm444, %v950, 0.0
          %v982 = vadd.f32 %v980, %v981
          %v983 = vsel %vm444, %v951, 0.0
          %v984 = vadd.f32 %v982, %v983
          %v985 = vsel %vm444, %v952, 0.0
          %v986 = vadd.f32 %v984, %v985
          %v987 = vsel %vm444, %v953, 0.0
          %v988 = vadd.f32 %v986, %v987
          %989 = vadd.xlane.f32.xlu0 %v988
          %v990 = vpop.xlane.xlu0 %989
          %v992 = vlaneseq
          %v993 = vand.u32 %v992, 127
          %v994 = vperm.slane %v990, %v993
          %vm996 = vcmask 8192
          %997 = vst.msk [vmem:[%s223] sm:$0x1] %vm996, %v994
        $region40: #{scenes_forward.1} parent=27 // pred_fallthru
          _
        %p998 = scmp.lt.s32.totalorder %s29, 1
        %s999 = scalar_select %p998, %s29, 1
        %s1000 = scalar_lea.vmem %s3, %s999
        // Predicated region
        $region41: #{scenes_forward.1} parent=27 // pred_check
          %p1001 = pneg %p111
        $region42: #{scenes_forward.1} parent=27 // pred_check_branch
          %1003 = sbr.rel (%p1001) target = $region44
        $region43: #{scenes_forward.1} parent=27 // pred_region
          _
        $region44: #{scenes_forward.1} parent=27 // pred_fallthru
          _
      $region28: #{scenes_forward.1} parent=5 // pred_fallthru
        _
      %p1004 = scmp.le.s32.totalorder 2, %s20
      // Predicated region
      $region45: #{scenes_forward.1} parent=5 // pred_check
        %p1005 = pneg %p1004
      $region46: #{scenes_forward.1} parent=5 // pred_check_branch
        %1007 = sbr.rel (%p1005) target = $region48
      $region47: #{scenes_forward.1} parent=5 // pred_region
        %s1008 = ssub.s32 %s20, 2
        // Predicated region
        $region49: #{scenes_forward.1} parent=47 // pred_check
          %p1009 = pneg %p117
        $region50: #{scenes_forward.1} parent=47 // pred_check_branch
          %1011 = sbr.rel (%p1009) target = $region52
        $region51: #{scenes_forward.1} parent=47 // pred_region
          %p1012 = scmp.lt.s32.totalorder %s31, 1
          %s1013 = scalar_select %p1012, %s31, 1
          %s1014 = scalar_lea.vmem %s3, %s1013
        $region52: #{scenes_forward.1} parent=47 // pred_fallthru
          _
      $region48: #{scenes_forward.1} parent=5 // pred_fallthru
        _
    $region6: #{scenes_forward.1} parent=1 // loop_footer
      %s24 = sadd.s32 1, %s20
    $region7: #{scenes_forward.1} parent=1 // loop_footer_branch
      %19 = sbr.rel target = $region3
    $region8: #{scenes_forward.1} parent=1 // loop_exit
      _
    %1015 = vsyncpa [#allocation6], 1
    %s1016 = scalar_lea.sflag [#allocation6], 1
    %1017 = vsyncpa %s1016, 1

</llo_original>
